<compile_context>
chip_gen: v7x
topology: tpu7x:2x2x1
jax: 0.10.0
libtpu: 0.0.40
codegen_flags: <defaults>
</compile_context>

<pallas_src>
import functools

import jax
import jax.numpy as jnp
from jax.experimental import pallas as pl
from jax.experimental.pallas import tpu as pltpu


# ----------------------------------------------------------------------------
# Tile helpers.  Fall back to the full dim for small shapes (full dims always
# satisfy the (8,128) block constraint); otherwise pick aligned divisors.
# ----------------------------------------------------------------------------
def _pick_tile(dim, target, align):
    if dim <= target:
        return dim
    t = (min(target, dim) // align) * align
    while t >= align:
        if dim % t == 0:
            return t
        t -= align
    return dim


def _pick_head_block(bh, target):
    if bh <= target:
        return bh
    t = (min(target, bh) // 8) * 8
    while t >= 8:
        if bh % t == 0:
            return t
        t -= 8
    return bh


# ----------------------------------------------------------------------------
# Kernel 1: fused Q/K/V projection (tiled GEMM, shared x block, 3 outputs).
# ----------------------------------------------------------------------------
def _qkv_proj_kernel(x_ref, wq_ref, wk_ref, wv_ref, bq_ref, bk_ref, bv_ref,
                     q_ref, k_ref, v_ref, accq_ref, acck_ref, accv_ref, *, scaling):
    @pl.when(pl.program_id(2) == 0)
    def _init():
        accq_ref[...] = jnp.zeros_like(accq_ref)
        acck_ref[...] = jnp.zeros_like(acck_ref)
        accv_ref[...] = jnp.zeros_like(accv_ref)

    x = x_ref[...]
    accq_ref[...] += jnp.dot(x, wq_ref[...], preferred_element_type=jnp.float32)
    acck_ref[...] += jnp.dot(x, wk_ref[...], preferred_element_type=jnp.float32)
    accv_ref[...] += jnp.dot(x, wv_ref[...], preferred_element_type=jnp.float32)

    @pl.when(pl.program_id(2) == pl.num_programs(2) - 1)
    def _finalize():
        # torch: q = q_proj(x) * scaling  (scaling applies to the bias too)
        q_ref[...] = ((accq_ref[...] + bq_ref[...]) * scaling).astype(q_ref.dtype)
        k_ref[...] = (acck_ref[...] + bk_ref[...]).astype(k_ref.dtype)
        v_ref[...] = (accv_ref[...] + bv_ref[...]).astype(v_ref.dtype)


def qkv_proj(x, wq, wk, wv, bq, bk, bv, scaling, *, tm=256, tn=256, tk=512):
    """x: (M, K); w*: (K, N); b*: (N,) -> (q, k, v) each (M, N)."""
    M, K = x.shape
    N = wq.shape[1]
    tm = _pick_tile(M, tm, 8)
    tn = _pick_tile(N, tn, 128)
    tk = _pick_tile(K, tk, 128)
    grid = (M // tm, N // tn, K // tk)
    x_spec = pl.BlockSpec((tm, tk), lambda i, j, k: (i, k))
    w_spec = pl.BlockSpec((tk, tn), lambda i, j, k: (k, j))
    b_spec = pl.BlockSpec((1, tn), lambda i, j, k: (0, j))
    o_spec = pl.BlockSpec((tm, tn), lambda i, j, k: (i, j))
    out_sds = jax.ShapeDtypeStruct((M, N), x.dtype)
    return pl.pallas_call(
        functools.partial(_qkv_proj_kernel, scaling=scaling),
        out_shape=(out_sds, out_sds, out_sds),
        grid_spec=pltpu.PrefetchScalarGridSpec(
            num_scalar_prefetch=0,
            grid=grid,
            in_specs=[x_spec, w_spec, w_spec, w_spec, b_spec, b_spec, b_spec],
            out_specs=(o_spec, o_spec, o_spec),
            scratch_shapes=[pltpu.VMEM((tm, tn), jnp.float32) for _ in range(3)],
        ),
        compiler_params=pltpu.CompilerParams(
            dimension_semantics=("parallel", "parallel", "arbitrary"),
            vmem_limit_bytes=32 * 1024 * 1024),
    )(x, wq, wk, wv, bq.reshape(1, N), bk.reshape(1, N), bv.reshape(1, N))


# ----------------------------------------------------------------------------
# Kernel 2: tiled linear projection (used for out_proj).
# ----------------------------------------------------------------------------
def _linear_kernel(x_ref, w_ref, b_ref, o_ref, acc_ref):
    @pl.when(pl.program_id(2) == 0)
    def _init():
        acc_ref[...] = jnp.zeros_like(acc_ref)

    acc_ref[...] += jnp.dot(x_ref[...], w_ref[...],
                            preferred_element_type=jnp.float32)

    @pl.when(pl.program_id(2) == pl.num_programs(2) - 1)
    def _finalize():
        o_ref[...] = (acc_ref[...] + b_ref[...]).astype(o_ref.dtype)


def linear(x, w, b, *, tm=256, tn=256, tk=512):
    """x: (M, K), w: (K, N), b: (N,) -> (M, N)."""
    M, K = x.shape
    N = w.shape[1]
    tm = _pick_tile(M, tm, 8)
    tn = _pick_tile(N, tn, 128)
    tk = _pick_tile(K, tk, 128)
    grid = (M // tm, N // tn, K // tk)
    return pl.pallas_call(
        _linear_kernel,
        out_shape=jax.ShapeDtypeStruct((M, N), x.dtype),
        grid_spec=pltpu.PrefetchScalarGridSpec(
            num_scalar_prefetch=0,
            grid=grid,
            in_specs=[
                pl.BlockSpec((tm, tk), lambda i, j, k: (i, k)),
                pl.BlockSpec((tk, tn), lambda i, j, k: (k, j)),
                pl.BlockSpec((1, tn), lambda i, j, k: (0, j)),
            ],
            out_specs=pl.BlockSpec((tm, tn), lambda i, j, k: (i, j)),
            scratch_shapes=[pltpu.VMEM((tm, tn), jnp.float32)],
        ),
        compiler_params=pltpu.CompilerParams(
            dimension_semantics=("parallel", "parallel", "arbitrary"),
            vmem_limit_bytes=32 * 1024 * 1024),
    )(x, w, b.reshape(1, N))


# ----------------------------------------------------------------------------
# Kernel 3: multi-head scaled-dot-product attention.
#   q/k/v/o blocks are (T, Hblk, D) slabs of the (T, B*H, D) layout (head split is
#   done by the BlockSpec index_map, no wrapper transposes).  Hblk heads per step.
# ----------------------------------------------------------------------------
def _attn_body(q, k, v, out_dtype):
    # q: (T, Hblk, D), k/v: (S, Hblk, D); q is already pre-scaled.
    # Batched contraction over D (no explicit k transpose -> MXU consumes k directly).
    s = jnp.einsum("qhd,khd->hqk", q, k,
                   preferred_element_type=jnp.float32)        # (Hblk, T, S)
    m = jnp.max(s, axis=-1, keepdims=True)
    p = jnp.exp(s - m)
    denom = jnp.sum(p, axis=-1, keepdims=True)                # (Hblk, T, 1)
    inv = pl.reciprocal(denom, approx=True)                   # EUP slot
    inv = inv * (2.0 - denom * inv)                           # one Newton step -> f32 precision
    probs = p * inv                                           # softmax
    o = jnp.einsum("hqk,khd->qhd", probs.astype(v.dtype), v,
                   preferred_element_type=jnp.float32)        # (T, Hblk, D)
    return o.astype(out_dtype), probs


def _attn_kernel(q_ref, k_ref, v_ref, o_ref):
    o, _ = _attn_body(q_ref[...], k_ref[...], v_ref[...], o_ref.dtype)
    o_ref[...] = o


def _attn_probs_kernel(q_ref, k_ref, v_ref, o_ref, w_ref):
    o, probs = _attn_body(q_ref[...], k_ref[...], v_ref[...], o_ref.dtype)
    w_ref[...] = probs.astype(w_ref.dtype)
    o_ref[...] = o


def multihead_sdpa(qh, kh, vh, *, output_attentions):
    """qh: (T, B*H, D), kh/vh: (S, B*H, D) -> out (T, B*H, D) [, probs (B*H, T, S)]."""
    T, BH, D = qh.shape
    S = kh.shape[0]
    # Cap the per-step (Hblk, T, S) f32 score tile around ~8 MiB (v7x-friendly).
    cap = max(8, (8 * 1024 * 1024) // max(1, 4 * T * S))
    hblk = _pick_head_block(BH, min(16, cap))
    grid = (BH // hblk,)

    q_spec = pl.BlockSpec((T, hblk, D), lambda h: (0, h, 0))
    kv_spec = pl.BlockSpec((S, hblk, D), lambda h: (0, h, 0))
    o_spec = pl.BlockSpec((T, hblk, D), lambda h: (0, h, 0))
    cparams = pltpu.CompilerParams(dimension_semantics=("parallel",),
                                   vmem_limit_bytes=32 * 1024 * 1024)

    if output_attentions:
        return pl.pallas_call(
            _attn_probs_kernel,
            out_shape=(jax.ShapeDtypeStruct((T, BH, D), qh.dtype),
                       jax.ShapeDtypeStruct((BH, T, S), jnp.float32)),
            grid_spec=pltpu.PrefetchScalarGridSpec(
                num_scalar_prefetch=0,
                grid=grid,
                in_specs=[q_spec, kv_spec, kv_spec],
                out_specs=(o_spec, pl.BlockSpec((hblk, T, S), lambda h: (h, 0, 0)))),
            compiler_params=cparams,
        )(qh, kh, vh)

    return pl.pallas_call(
        _attn_kernel,
        out_shape=jax.ShapeDtypeStruct((T, BH, D), qh.dtype),
        grid_spec=pltpu.PrefetchScalarGridSpec(
            num_scalar_prefetch=0,
            grid=grid,
            in_specs=[q_spec, kv_spec, kv_spec],
            out_specs=o_spec),
        compiler_params=cparams,
    )(qh, kh, vh)


# ----------------------------------------------------------------------------
# Module forward (wrapper does only free reshapes; all compute in Pallas)
# ----------------------------------------------------------------------------
def attention_forward(query, params, num_heads, output_attentions=True):
    """query: (T, B, E). Returns (attn_output (T, B, E), attn_weights (B, H, T, T) or None)."""
    T, B, E = query.shape
    H = num_heads
    D = E // H
    scaling = D ** (-0.5)

    x2d = query.reshape(T * B, E)

    # Fused QKV projection; scaling folded into the Q epilogue inside the kernel.
    q, k, v = qkv_proj(x2d, params["wq"], params["wk"], params["wv"],
                       params["bq"], params["bk"], params["bv"], scaling)

    # (T*B, E) -> (T, B*H, D): pure reshape (same memory layout as torch's
    # view(T, B*H, D)); the per-head transpose is absorbed into the attention
    # kernel's BlockSpec index_map.
    qh = q.reshape(T, B * H, D)
    kh = k.reshape(T, B * H, D)
    vh = v.reshape(T, B * H, D)

    if output_attentions:
        attn_out, attn_probs = multihead_sdpa(qh, kh, vh, output_attentions=True)
        attn_weights_reshaped = attn_probs.reshape(B, H, T, T)
    else:
        attn_out = multihead_sdpa(qh, kh, vh, output_attentions=False)
        attn_weights_reshaped = None

    # dropout p=0.0 -> identity (module default).
    # (T, B*H, D) -> (T*B, E): pure reshape (kernel already wrote time-major output,
    # matching torch's transpose(0,1).view(T, B, E)).
    out2d = attn_out.reshape(T * B, E)
    out = linear(out2d, params["wo"], params["bo"]).reshape(T, B, E)
    return out, attn_weights_reshaped


# ----------------------------------------------------------------------------
# Pure-jnp reference for correctness checking
# ----------------------------------------------------------------------------
def attention_reference(query, params, num_heads):
    T, B, E = query.shape
    H = num_heads
    D = E // H
    scaling = D ** (-0.5)
    x = query.reshape(T * B, E)
    q = (x @ params["wq"] + params["bq"]) * scaling
    k = x @ params["wk"] + params["bk"]
    v = x @ params["wv"] + params["bv"]
    sh = lambda t: t.reshape(T, B * H, D).transpose(1, 0, 2)
    qh, kh, vh = sh(q), sh(k), sh(v)
    s = jnp.einsum("btd,bsd->bts", qh, kh)
    p = jax.nn.softmax(s, axis=-1)
    o = jnp.einsum("bts,bsd->btd", p, vh)
    o = o.transpose(1, 0, 2).reshape(T * B, E)
    o = (o @ params["wo"] + params["bo"]).reshape(T, B, E)
    return o, p.reshape(B, H, T, T)


# ----------------------------------------------------------------------------
# Deterministic parameter init (nn.Linear-style uniform)
# ----------------------------------------------------------------------------
def init_params(key, embed_dim):
    bound = 1.0 / (embed_dim ** 0.5)
    ks = jax.random.split(key, 8)
    u = lambda k, shp: jax.random.uniform(k, shp, jnp.float32, -bound, bound)
    return {
        # stored as (in, out) so kernels do x @ W + b (== torch x @ W.T + b)
        "wq": u(ks[0], (embed_dim, embed_dim)), "bq": u(ks[1], (embed_dim,)),
        "wk": u(ks[2], (embed_dim, embed_dim)), "bk": u(ks[3], (embed_dim,)),
        "wv": u(ks[4], (embed_dim, embed_dim)), "bv": u(ks[5], (embed_dim,)),
        "wo": u(ks[6], (embed_dim, embed_dim)), "bo": u(ks[7], (embed_dim,)),
    }


if __name__ == "__main__":
    # small shapes: seq=8, batch=2, embed_dim=32, num_heads=4 (head_dim=8)
    T, B, E, H = 8, 2, 32, 4
    key = jax.random.PRNGKey(0)
    k_x, k_p = jax.random.split(key)
    query = jax.random.normal(k_x, (T, B, E), jnp.float32)
    params = init_params(k_p, E)

    # output_attentions=True path (exercises the probs-writing kernel)
    out, attn_w = attention_forward(query, params, num_heads=H,
                                    output_attentions=True)
    out = jax.block_until_ready(out)
    attn_w = jax.block_until_ready(attn_w)

    # output_attentions=False path (exercises the no-probs kernel)
    out_np, none_w = attention_forward(query, params, num_heads=H,
                                       output_attentions=False)
    out_np = jax.block_until_ready(out_np)

    ref_out, ref_w = attention_reference(query, params, num_heads=H)
    assert out.shape == (T, B, E) and attn_w.shape == (B, H, T, T)
    assert none_w is None
    assert jnp.allclose(out, ref_out, atol=1e-4, rtol=1e-4)
    assert jnp.allclose(out_np, ref_out, atol=1e-4, rtol=1e-4)
    assert jnp.allclose(attn_w, ref_w, atol=1e-4, rtol=1e-4)

    print("KERNEL_OK")
</pallas_src>

<mosaic_0001>
module attributes {stable_mosaic.version = 11 : i64} {
  func.func @_qkv_proj_kernel(%arg0: i32, %arg1: i32, %arg2: i32, %arg3: memref<16x32xf32, #tpu.memory_space<vmem>>, %arg4: memref<32x32xf32, #tpu.memory_space<vmem>>, %arg5: memref<32x32xf32, #tpu.memory_space<vmem>>, %arg6: memref<32x32xf32, #tpu.memory_space<vmem>>, %arg7: memref<1x32xf32, #tpu.memory_space<vmem>>, %arg8: memref<1x32xf32, #tpu.memory_space<vmem>>, %arg9: memref<1x32xf32, #tpu.memory_space<vmem>>, %arg10: memref<16x32xf32, #tpu.memory_space<vmem>>, %arg11: memref<16x32xf32, #tpu.memory_space<vmem>>, %arg12: memref<16x32xf32, #tpu.memory_space<vmem>>, %arg13: memref<16x32xf32, #tpu.memory_space<vmem>>, %arg14: memref<16x32xf32, #tpu.memory_space<vmem>>, %arg15: memref<16x32xf32, #tpu.memory_space<vmem>>) attributes {dimension_semantics = [#tpu.dimension_semantics<parallel>, #tpu.dimension_semantics<parallel>, #tpu.dimension_semantics<arbitrary>], iteration_bounds = array<i64: 1, 1, 1>, scalar_prefetch = 0 : i64, scratch_operands = 3 : i64, tpu.core_type = #tpu.core_type<tc>, window_params = [{transform_indices = @transform_0, window_bounds = array<i64: 16, 32>}, {transform_indices = @transform_1, window_bounds = array<i64: 32, 32>}, {transform_indices = @transform_2, window_bounds = array<i64: 32, 32>}, {transform_indices = @transform_3, window_bounds = array<i64: 32, 32>}, {transform_indices = @transform_4, window_bounds = array<i64: 1, 32>}, {transform_indices = @transform_5, window_bounds = array<i64: 1, 32>}, {transform_indices = @transform_6, window_bounds = array<i64: 1, 32>}, {transform_indices = @transform_7, window_bounds = array<i64: 16, 32>}, {transform_indices = @transform_8, window_bounds = array<i64: 16, 32>}, {transform_indices = @transform_9, window_bounds = array<i64: 16, 32>}]} {
    %c0_i32 = arith.constant 0 : i32
    %0 = arith.cmpi eq, %arg2, %c0_i32 : i32
    %1 = arith.extui %0 : i1 to i32
    %c0_i32_0 = arith.constant 0 : i32
    %2 = arith.cmpi ne, %1, %c0_i32_0 : i32
    scf.if %2 {
      %cst_24 = arith.constant 0.000000e+00 : f32
      %22 = vector.broadcast %cst_24 : f32 to vector<16x32xf32>
      %c0_25 = arith.constant 0 : index
      %c0_26 = arith.constant 0 : index
      %23 = vector.load %arg13[%c0_25, %c0_26] : memref<16x32xf32, #tpu.memory_space<vmem>>, vector<16x32xf32>
      tpu.vector_store %arg13[%c0_25, %c0_26], %22 {strides = array<i32>} : memref<16x32xf32, #tpu.memory_space<vmem>>, vector<16x32xf32>,
      %cst_27 = arith.constant 0.000000e+00 : f32
      %24 = vector.broadcast %cst_27 : f32 to vector<16x32xf32>
      %c0_28 = arith.constant 0 : index
      %c0_29 = arith.constant 0 : index
      %25 = vector.load %arg14[%c0_28, %c0_29] : memref<16x32xf32, #tpu.memory_space<vmem>>, vector<16x32xf32>
      tpu.vector_store %arg14[%c0_28, %c0_29], %24 {strides = array<i32>} : memref<16x32xf32, #tpu.memory_space<vmem>>, vector<16x32xf32>,
      %cst_30 = arith.constant 0.000000e+00 : f32
      %26 = vector.broadcast %cst_30 : f32 to vector<16x32xf32>
      %c0_31 = arith.constant 0 : index
      %c0_32 = arith.constant 0 : index
      %27 = vector.load %arg15[%c0_31, %c0_32] : memref<16x32xf32, #tpu.memory_space<vmem>>, vector<16x32xf32>
      tpu.vector_store %arg15[%c0_31, %c0_32], %26 {strides = array<i32>} : memref<16x32xf32, #tpu.memory_space<vmem>>, vector<16x32xf32>,
    } else {
    }
    %c0 = arith.constant 0 : index
    %c0_1 = arith.constant 0 : index
    %3 = vector.load %arg3[%c0, %c0_1] : memref<16x32xf32, #tpu.memory_space<vmem>>, vector<16x32xf32>
    %c0_2 = arith.constant 0 : index
    %c0_3 = arith.constant 0 : index
    %4 = vector.load %arg13[%c0_2, %c0_3] : memref<16x32xf32, #tpu.memory_space<vmem>>, vector<16x32xf32>
    %c0_4 = arith.constant 0 : index
    %c0_5 = arith.constant 0 : index
    %5 = vector.load %arg4[%c0_4, %c0_5] : memref<32x32xf32, #tpu.memory_space<vmem>>, vector<32x32xf32>
    %cst = arith.constant dense<0.000000e+00> : vector<16x32xf32>
    %6 = tpu.matmul %3, %5, %cst {dimension_numbers = #tpu.dot_dimension_numbers<[1], [0], [0], [1], [0, 0, 1, 1], [], []>} : vector<16x32xf32>, vector<32x32xf32>, vector<16x32xf32> -> vector<16x32xf32>
    %7 = arith.addf %4, %6 : vector<16x32xf32>
    %c0_6 = arith.constant 0 : index
    %c0_7 = arith.constant 0 : index
    %8 = vector.load %arg13[%c0_6, %c0_7] : memref<16x32xf32, #tpu.memory_space<vmem>>, vector<16x32xf32>
    tpu.vector_store %arg13[%c0_6, %c0_7], %7 {strides = array<i32>} : memref<16x32xf32, #tpu.memory_space<vmem>>, vector<16x32xf32>,
    %c0_8 = arith.constant 0 : index
    %c0_9 = arith.constant 0 : index
    %9 = vector.load %arg14[%c0_8, %c0_9] : memref<16x32xf32, #tpu.memory_space<vmem>>, vector<16x32xf32>
    %c0_10 = arith.constant 0 : index
    %c0_11 = arith.constant 0 : index
    %10 = vector.load %arg5[%c0_10, %c0_11] : memref<32x32xf32, #tpu.memory_space<vmem>>, vector<32x32xf32>
    %cst_12 = arith.constant dense<0.000000e+00> : vector<16x32xf32>
    %11 = tpu.matmul %3, %10, %cst_12 {dimension_numbers = #tpu.dot_dimension_numbers<[1], [0], [0], [1], [0, 0, 1, 1], [], []>} : vector<16x32xf32>, vector<32x32xf32>, vector<16x32xf32> -> vector<16x32xf32>
    %12 = arith.addf %9, %11 : vector<16x32xf32>
    %c0_13 = arith.constant 0 : index
    %c0_14 = arith.constant 0 : index
    %13 = vector.load %arg14[%c0_13, %c0_14] : memref<16x32xf32, #tpu.memory_space<vmem>>, vector<16x32xf32>
    tpu.vector_store %arg14[%c0_13, %c0_14], %12 {strides = array<i32>} : memref<16x32xf32, #tpu.memory_space<vmem>>, vector<16x32xf32>,
    %c0_15 = arith.constant 0 : index
    %c0_16 = arith.constant 0 : index
    %14 = vector.load %arg15[%c0_15, %c0_16] : memref<16x32xf32, #tpu.memory_space<vmem>>, vector<16x32xf32>
    %c0_17 = arith.constant 0 : index
    %c0_18 = arith.constant 0 : index
    %15 = vector.load %arg6[%c0_17, %c0_18] : memref<32x32xf32, #tpu.memory_space<vmem>>, vector<32x32xf32>
    %cst_19 = arith.constant dense<0.000000e+00> : vector<16x32xf32>
    %16 = tpu.matmul %3, %15, %cst_19 {dimension_numbers = #tpu.dot_dimension_numbers<[1], [0], [0], [1], [0, 0, 1, 1], [], []>} : vector<16x32xf32>, vector<32x32xf32>, vector<16x32xf32> -> vector<16x32xf32>
    %17 = arith.addf %14, %16 : vector<16x32xf32>
    %c0_20 = arith.constant 0 : index
    %c0_21 = arith.constant 0 : index
    %18 = vector.load %arg15[%c0_20, %c0_21] : memref<16x32xf32, #tpu.memory_space<vmem>>, vector<16x32xf32>
    tpu.vector_store %arg15[%c0_20, %c0_21], %17 {strides = array<i32>} : memref<16x32xf32, #tpu.memory_space<vmem>>, vector<16x32xf32>,
    %c0_i32_22 = arith.constant 0 : i32
    %19 = arith.cmpi eq, %arg2, %c0_i32_22 : i32
    %20 = arith.extui %19 : i1 to i32
    %c0_i32_23 = arith.constant 0 : i32
    %21 = arith.cmpi ne, %20, %c0_i32_23 : i32
    scf.if %21 {
      %c0_24 = arith.constant 0 : index
      %c0_25 = arith.constant 0 : index
      %22 = vector.load %arg13[%c0_24, %c0_25] : memref<16x32xf32, #tpu.memory_space<vmem>>, vector<16x32xf32>
      %c0_26 = arith.constant 0 : index
      %c0_27 = arith.constant 0 : index
      %23 = vector.load %arg7[%c0_26, %c0_27] : memref<1x32xf32, #tpu.memory_space<vmem>>, vector<1x32xf32>
      %24 = vector.broadcast %23 : vector<1x32xf32> to vector<16x32xf32>
      %25 = arith.addf %22, %24 : vector<16x32xf32>
      %cst_28 = arith.constant 0.353553385 : f32
      %26 = vector.broadcast %cst_28 : f32 to vector<16x32xf32>
      %27 = arith.mulf %25, %26 : vector<16x32xf32>
      %c0_29 = arith.constant 0 : index
      %c0_30 = arith.constant 0 : index
      %28 = vector.load %arg10[%c0_29, %c0_30] : memref<16x32xf32, #tpu.memory_space<vmem>>, vector<16x32xf32>
      tpu.vector_store %arg10[%c0_29, %c0_30], %27 {strides = array<i32>} : memref<16x32xf32, #tpu.memory_space<vmem>>, vector<16x32xf32>,
      %c0_31 = arith.constant 0 : index
      %c0_32 = arith.constant 0 : index
      %29 = vector.load %arg14[%c0_31, %c0_32] : memref<16x32xf32, #tpu.memory_space<vmem>>, vector<16x32xf32>
      %c0_33 = arith.constant 0 : index
      %c0_34 = arith.constant 0 : index
      %30 = vector.load %arg8[%c0_33, %c0_34] : memref<1x32xf32, #tpu.memory_space<vmem>>, vector<1x32xf32>
      %31 = vector.broadcast %30 : vector<1x32xf32> to vector<16x32xf32>
      %32 = arith.addf %29, %31 : vector<16x32xf32>
      %c0_35 = arith.constant 0 : index
      %c0_36 = arith.constant 0 : index
      %33 = vector.load %arg11[%c0_35, %c0_36] : memref<16x32xf32, #tpu.memory_space<vmem>>, vector<16x32xf32>
      tpu.vector_store %arg11[%c0_35, %c0_36], %32 {strides = array<i32>} : memref<16x32xf32, #tpu.memory_space<vmem>>, vector<16x32xf32>,
      %c0_37 = arith.constant 0 : index
      %c0_38 = arith.constant 0 : index
      %34 = vector.load %arg15[%c0_37, %c0_38] : memref<16x32xf32, #tpu.memory_space<vmem>>, vector<16x32xf32>
      %c0_39 = arith.constant 0 : index
      %c0_40 = arith.constant 0 : index
      %35 = vector.load %arg9[%c0_39, %c0_40] : memref<1x32xf32, #tpu.memory_space<vmem>>, vector<1x32xf32>
      %36 = vector.broadcast %35 : vector<1x32xf32> to vector<16x32xf32>
      %37 = arith.addf %34, %36 : vector<16x32xf32>
      %c0_41 = arith.constant 0 : index
      %c0_42 = arith.constant 0 : index
      %38 = vector.load %arg12[%c0_41, %c0_42] : memref<16x32xf32, #tpu.memory_space<vmem>>, vector<16x32xf32>
      tpu.vector_store %arg12[%c0_41, %c0_42], %37 {strides = array<i32>} : memref<16x32xf32, #tpu.memory_space<vmem>>, vector<16x32xf32>,
    } else {
    }
    return
  }
  func.func @transform_0(%arg0: i32, %arg1: i32, %arg2: i32) -> (i32, i32) {
    %c0_i32 = arith.constant 0 : i32
    return %arg0, %arg2 : i32, i32
  }
  func.func @transform_1(%arg0: i32, %arg1: i32, %arg2: i32) -> (i32, i32) {
    %c0_i32 = arith.constant 0 : i32
    return %arg2, %arg1 : i32, i32
  }
  func.func @transform_2(%arg0: i32, %arg1: i32, %arg2: i32) -> (i32, i32) {
    %c0_i32 = arith.constant 0 : i32
    return %arg2, %arg1 : i32, i32
  }
  func.func @transform_3(%arg0: i32, %arg1: i32, %arg2: i32) -> (i32, i32) {
    %c0_i32 = arith.constant 0 : i32
    return %arg2, %arg1 : i32, i32
  }
  func.func @transform_4(%arg0: i32, %arg1: i32, %arg2: i32) -> (i32, i32) {
    %c0_i32 = arith.constant 0 : i32
    %c0_i32_0 = arith.constant 0 : i32
    return %c0_i32, %arg1 : i32, i32
  }
  func.func @transform_5(%arg0: i32, %arg1: i32, %arg2: i32) -> (i32, i32) {
    %c0_i32 = arith.constant 0 : i32
    %c0_i32_0 = arith.constant 0 : i32
    return %c0_i32, %arg1 : i32, i32
  }
  func.func @transform_6(%arg0: i32, %arg1: i32, %arg2: i32) -> (i32, i32) {
    %c0_i32 = arith.constant 0 : i32
    %c0_i32_0 = arith.constant 0 : i32
    return %c0_i32, %arg1 : i32, i32
  }
  func.func @transform_7(%arg0: i32, %arg1: i32, %arg2: i32) -> (i32, i32) {
    %c0_i32 = arith.constant 0 : i32
    return %arg0, %arg1 : i32, i32
  }
  func.func @transform_8(%arg0: i32, %arg1: i32, %arg2: i32) -> (i32, i32) {
    %c0_i32 = arith.constant 0 : i32
    return %arg0, %arg1 : i32, i32
  }
  func.func @transform_9(%arg0: i32, %arg1: i32, %arg2: i32) -> (i32, i32) {
    %c0_i32 = arith.constant 0 : i32
    return %arg0, %arg1 : i32, i32
  }
}

</mosaic_0001>

<llo_original>
// kernel: tpu_custom_call.1
$region0: #{tpu_custom_call.1}
  #allocation0 [shape = 'u32[]', space=smem, size = 0x4, offset = 0x4, fixed_abs, tag = 'smem constant byte address 0x4 - core index']
  #allocation1 [shape = 'u32[144,128]{1,0:T(1,128)}', space=vmem, size = 0x12000, scoped, tag = 'internal scratch']
  #allocation2 [shape = 'f32[16,32]{1,0:T(8,128)}', space=vmem, size = 0x2000, scoped, tag = 'scratch operand']
  #allocation3 [shape = 'f32[16,32]{1,0:T(8,128)}', space=vmem, size = 0x2000, scoped, tag = 'scratch operand']
  #allocation4 [shape = 'f32[16,32]{1,0:T(8,128)}', space=vmem, size = 0x2000, scoped, tag = 'scratch operand']
  %s0 = inlined_call_operand.hbm [shape: f32[16,32], index: 0, kind: input, shape index: {}]
  %s1 = inlined_call_operand.hbm [shape: f32[32,32], index: 1, kind: input, shape index: {}]
  %s2 = inlined_call_operand.hbm [shape: f32[32,32], index: 2, kind: input, shape index: {}]
  %s3 = inlined_call_operand.hbm [shape: f32[32,32], index: 3, kind: input, shape index: {}]
  %s4 = inlined_call_operand.vmem [shape: f32[1,32], index: 4, kind: input, shape index: {}]
  %s5 = inlined_call_operand.vmem [shape: f32[1,32], index: 5, kind: input, shape index: {}]
  %s6 = inlined_call_operand.vmem [shape: f32[1,32], index: 6, kind: input, shape index: {}]
  %s7 = inlined_call_operand.hbm [shape: f32[16,32], index: 7, kind: output, shape index: {0}]
  %s8 = inlined_call_operand.hbm [shape: f32[16,32], index: 8, kind: output, shape index: {1}]
  %s9 = inlined_call_operand.hbm [shape: f32[16,32], index: 9, kind: output, shape index: {2}]
  %10 = xla_tuple %s7, %s8, %s9
  %s11 = sld [smem:[#allocation0]]
  $region78: #{tpu_custom_call.1} parent=0
    _
  %s13 = ssub.s32 1, %s11
  %s14 = scalar_select 0, %s13, %s11
  $region1: #{tpu_custom_call.1} parent=0
    #allocation5 [shape = 'u8[8192]{0}', space=vmem, size = 0x2000, scoped, tag = 'input window, operand 0, single buffered']
    #allocation6 [shape = 's32[1]{0}', space=sflag, size = 0x4, scoped, tag = 'scoped memory for tpu_custom_call.1']
    #allocation7 [shape = 's32[1]{0}', space=sflag, size = 0x4, scoped, tag = 'scoped memory for tpu_custom_call.1']
    #allocation8 [shape = 'u8[16384]{0}', space=vmem, size = 0x4000, scoped, tag = 'input window, operand 1, single buffered']
    #allocation9 [shape = 's32[1]{0}', space=sflag, size = 0x4, scoped, tag = 'scoped memory for tpu_custom_call.1']
    #allocation10 [shape = 'u8[16384]{0}', space=vmem, size = 0x4000, scoped, tag = 'input window, operand 2, single buffered']
    #allocation11 [shape = 'u8[16384]{0}', space=vmem, size = 0x4000, scoped, tag = 'input window, operand 3, single buffered']
    #allocation12 [shape = 's32[1]{0}', space=sflag, size = 0x4, scoped, tag = 'scoped memory for tpu_custom_call.1']
    #allocation13 [shape = 'u8[8192]{0}', space=vmem, size = 0x2000, scoped, tag = 'output window, operand 0, single buffered']
    #allocation14 [shape = 'u8[8192]{0}', space=vmem, size = 0x2000, scoped, tag = 'output window, operand 1, single buffered']
    #allocation15 [shape = 's32[1]{0}', space=sflag, size = 0x4, scoped, tag = 'scoped memory for tpu_custom_call.1']
    #allocation16 [shape = 'u8[8192]{0}', space=vmem, size = 0x2000, scoped, tag = 'output window, operand 2, single buffered']
    %15 = vsyncpa [#allocation6], 0
    %16 = vsyncpa [#allocation9], 0
    %17 = vsyncpa [#allocation12], 0
    %18 = vsyncpa [#allocation7], 0
    %19 = vsyncpa [#allocation15], 0
    // Predicated region
    $region2: #{tpu_custom_call.1} parent=1 // pred_check
      _
    $region3: #{tpu_custom_call.1} parent=1 // pred_check_branch
      %21 = sbr.rel (0) target = $region5
    $region4: #{tpu_custom_call.1} parent=1 // pred_region
      %s23 = ssub.s32 256, 256
      %24 = vsyncadd [#allocation6], %s23
      %s25 = sshll.u32 [#allocation5], 4
      %s26 = int_to_ptr.vmem [resolvable:$true] %s25
      %31 = dma.hbm_to_vmem [thread:$0]  %s0, 256, %s26, [#allocation6], 128, 128, 8
    $region5: #{tpu_custom_call.1} parent=1 // pred_fallthru
      _
    // Predicated region
    $region6: #{tpu_custom_call.1} parent=1 // pred_check
      _
    $region7: #{tpu_custom_call.1} parent=1 // pred_check_branch
      %33 = sbr.rel (0) target = $region9
    $region8: #{tpu_custom_call.1} parent=1 // pred_region
      %s35 = ssub.s32 512, 512
      %36 = vsyncadd [#allocation9], %s35
      %s37 = sshll.u32 [#allocation8], 4
      %s38 = int_to_ptr.vmem [resolvable:$true] %s37
      %43 = dma.hbm_to_vmem [thread:$0]  %s1, 512, %s38, [#allocation9], 128, 128, 8
    $region9: #{tpu_custom_call.1} parent=1 // pred_fallthru
      _
    // Predicated region
    $region10: #{tpu_custom_call.1} parent=1 // pred_check
      _
    $region11: #{tpu_custom_call.1} parent=1 // pred_check_branch
      %45 = sbr.rel (0) target = $region13
    $region12: #{tpu_custom_call.1} parent=1 // pred_region
      %s47 = ssub.s32 512, 512
      %48 = vsyncadd [#allocation9], %s47
      %s49 = sshll.u32 [#allocation10], 4
      %s50 = int_to_ptr.vmem [resolvable:$true] %s49
      %55 = dma.hbm_to_vmem [thread:$0]  %s2, 512, %s50, [#allocation9], 128, 128, 8
    $region13: #{tpu_custom_call.1} parent=1 // pred_fallthru
      _
    // Predicated region
    $region14: #{tpu_custom_call.1} parent=1 // pred_check
      _
    $region15: #{tpu_custom_call.1} parent=1 // pred_check_branch
      %57 = sbr.rel (0) target = $region17
    $region16: #{tpu_custom_call.1} parent=1 // pred_region
      %s59 = ssub.s32 512, 512
      %60 = vsyncadd [#allocation12], %s59
      %s61 = sshll.u32 [#allocation11], 4
      %s62 = int_to_ptr.vmem [resolvable:$true] %s61
      %67 = dma.hbm_to_vmem [thread:$0]  %s3, 512, %s62, [#allocation12], 128, 128, 8
    $region17: #{tpu_custom_call.1} parent=1 // pred_fallthru
      _
    // Predicated region
    $region18: #{tpu_custom_call.1} parent=1 // pred_check
      _
    $region19: #{tpu_custom_call.1} parent=1 // pred_check_branch
      %69 = sbr.rel (0) target = $region21
    $region20: #{tpu_custom_call.1} parent=1 // pred_region
      _
    $region21: #{tpu_custom_call.1} parent=1 // pred_fallthru
      _
    // Predicated region
    $region22: #{tpu_custom_call.1} parent=1 // pred_check
      _
    $region23: #{tpu_custom_call.1} parent=1 // pred_check_branch
      %71 = sbr.rel (0) target = $region25
    $region24: #{tpu_custom_call.1} parent=1 // pred_region
      _
    $region25: #{tpu_custom_call.1} parent=1 // pred_fallthru
      _
    // Predicated region
    $region26: #{tpu_custom_call.1} parent=1 // pred_check
      _
    $region27: #{tpu_custom_call.1} parent=1 // pred_check_branch
      %73 = sbr.rel (0) target = $region29
    $region28: #{tpu_custom_call.1} parent=1 // pred_region
      _
    $region29: #{tpu_custom_call.1} parent=1 // pred_fallthru
      _
    // Predicated region
    $region30: #{tpu_custom_call.1} parent=1 // pred_check
      _
    $region31: #{tpu_custom_call.1} parent=1 // pred_check_branch
      %75 = sbr.rel (0) target = $region33
    $region32: #{tpu_custom_call.1} parent=1 // pred_region
      %76 = dma.done [#allocation6], 256
    $region33: #{tpu_custom_call.1} parent=1 // pred_fallthru
      _
    // Predicated region
    $region34: #{tpu_custom_call.1} parent=1 // pred_check
      _
    $region35: #{tpu_custom_call.1} parent=1 // pred_check_branch
      %78 = sbr.rel (0) target = $region37
    $region36: #{tpu_custom_call.1} parent=1 // pred_region
      %79 = dma.done [#allocation9], 512
    $region37: #{tpu_custom_call.1} parent=1 // pred_fallthru
      _
    // Predicated region
    $region38: #{tpu_custom_call.1} parent=1 // pred_check
      _
    $region39: #{tpu_custom_call.1} parent=1 // pred_check_branch
      %81 = sbr.rel (0) target = $region41
    $region40: #{tpu_custom_call.1} parent=1 // pred_region
      %82 = dma.done [#allocation9], 512
    $region41: #{tpu_custom_call.1} parent=1 // pred_fallthru
      _
    // Predicated region
    $region42: #{tpu_custom_call.1} parent=1 // pred_check
      _
    $region43: #{tpu_custom_call.1} parent=1 // pred_check_branch
      %84 = sbr.rel (0) target = $region45
    $region44: #{tpu_custom_call.1} parent=1 // pred_region
      %85 = dma.done [#allocation12], 512
    $region45: #{tpu_custom_call.1} parent=1 // pred_fallthru
      _
    %p86 = scmp.eq.s32.totalorder 0, 0
    // Predicated region
    $region46: #{tpu_custom_call.1} parent=1 // pred_check
      %p87 = pneg %p86
    $region47: #{tpu_custom_call.1} parent=1 // pred_check_branch
      %89 = sbr.rel (%p87) target = $region49
    $region48: #{tpu_custom_call.1} parent=1 // pred_region
      %vm90 = vcmask 261120
      %91 = vst.msk [vmem:[#allocation2] sm:$0xff] %vm90, 0.0
      %92 = vst.msk [vmem:[#allocation2 + $0x8] sm:$0xff] %vm90, 0.0
      %93 = vst.msk [vmem:[#allocation3] sm:$0xff] %vm90, 0.0
      %94 = vst.msk [vmem:[#allocation3 + $0x8] sm:$0xff] %vm90, 0.0
      %95 = vst.msk [vmem:[#allocation4] sm:$0xff] %vm90, 0.0
      %96 = vst.msk [vmem:[#allocation4 + $0x8] sm:$0xff] %vm90, 0.0
    $region49: #{tpu_custom_call.1} parent=1 // pred_fallthru
      _
    %v97 = vld [vmem:[#allocation5] sm:$0xff]
    %v98 = vld [vmem:[#allocation5 + $0x8] sm:$0xff]
    %v99 = vld [vmem:[#allocation2] sm:$0xff]
    %v100 = vld [vmem:[#allocation2 + $0x8] sm:$0xff]
    %v101 = vld [vmem:[#allocation8] sm:$0xff]
    %v102 = vld [vmem:[#allocation8 + $0x8] sm:$0xff]
    %v103 = vld [vmem:[#allocation8 + $0x10] sm:$0xff]
    %v104 = vld [vmem:[#allocation8 + $0x18] sm:$0xff]
    %vm105 = vcmask 261120
    %v107 = vsel %vm105, %v97, 0
    %v110 = vsel %vm105, %v98, 0
    %112 = vmatprep.subr.mxu0 0.0
    %113 = vmatpush1.msra.mxu0 %v101
    %114 = vmatprep.subr.mxu0 0.0
    %115 = vmatpush1.msra.mxu0 %v102
    %116 = vmatprep.subr.mxu0 0.0
    %117 = vmatpush1.msra.mxu0 %v103
    %118 = vmatprep.subr.mxu0 0.0
    %119 = vmatpush1.msra.mxu0 %v104
    %120 = vmatprep.subr.mxu0 0.0
    %121 = vmatpush1.msra.mxu0 0.0
    %122 = vmatprep.subr.mxu0 0.0
    %123 = vmatpush1.msra.mxu0 0.0
    %124 = vmatprep.subr.mxu0 0.0
    %125 = vmatpush1.msra.mxu0 0.0
    %126 = vmatprep.subr.mxu0 0.0
    %127 = vmatpush1.msra.mxu0 0.0
    %128 = vmatprep.subr.mxu0 0.0
    %129 = vmatpush1.msra.mxu0 0.0
    %130 = vmatprep.subr.mxu0 0.0
    %131 = vmatpush1.msra.mxu0 0.0
    %132 = vmatprep.subr.mxu0 0.0
    %133 = vmatpush1.msra.mxu0 0.0
    %134 = vmatprep.subr.mxu0 0.0
    %135 = vmatpush1.msra.mxu0 0.0
    %136 = vmatprep.subr.mxu0 0.0
    %137 = vmatpush1.msra.mxu0 0.0
    %138 = vmatprep.subr.mxu0 0.0
    %139 = vmatpush1.msra.mxu0 0.0
    %140 = vmatprep.subr.mxu0 0.0
    %141 = vmatpush1.msra.mxu0 0.0
    %142 = vmatprep.subr.mxu0 0.0
    %143 = vmatpush1.msra.mxu0 0.0
    %144 = vmatprep.subr.mxu0 0.0
    %145 = vmatpush1.msra.mxu0 0.0
    %146 = vmatprep.subr.mxu0 0.0
    %147 = vmatpush1.msra.mxu0 0.0
    %148 = vmatprep.subr.mxu0 0.0
    %149 = vmatpush1.msra.mxu0 0.0
    %150 = vmatprep.subr.mxu0 0.0
    %151 = vmatpush1.msra.mxu0 0.0
    %152 = vmatprep.subr.mxu0 0.0
    %153 = vmatpush1.msra.mxu0 0.0
    %154 = vmatprep.subr.mxu0 0.0
    %155 = vmatpush1.msra.mxu0 0.0
    %156 = vmatprep.subr.mxu0 0.0
    %157 = vmatpush1.msra.mxu0 0.0
    %158 = vmatprep.subr.mxu0 0.0
    %159 = vmatpush1.msra.mxu0 0.0
    %160 = vmatprep.subr.mxu0 0.0
    %161 = vmatpush1.msra.mxu0 0.0
    %162 = vmatprep.subr.mxu0 0.0
    %163 = vmatpush1.msra.mxu0 0.0
    %164 = vmatprep.subr.mxu0 0.0
    %165 = vmatpush1.msra.mxu0 0.0
    %166 = vmatprep.subr.mxu0 0.0
    %167 = vmatpush1.msra.mxu0 0.0
    %168 = vmatprep.subr.mxu0 0.0
    %169 = vmatpush1.msra.mxu0 0.0
    %170 = vmatprep.subr.mxu0 0.0
    %171 = vmatpush1.msra.mxu0 0.0
    %172 = vmatprep.subr.mxu0 0.0
    %173 = vmatpush1.msra.mxu0 0.0
    %174 = vmatprep.subr.mxu0 0.0
    %175 = vmatpush1.msra.mxu0 0.0
    %176 = vmatprep.mubr.f32.mxu0 0.0
    %177 = vmatmul.mubr.f32.gmra.mrb[0].mxu0 %v107
    %v178 = vpop.f32.mrb[0].mxu0
    %v179 = vadd.f32 0.0, %v178
    %v180 = vpop.f32.mrb[0].mxu0
    %181 = vmatprep.mubr.f32.mxu0 0.0
    %182 = vmatmul.mubr.f32.gmra.mrb[0].mxu0 %v110
    %v183 = vpop.f32.mrb[0].mxu0
    %v184 = vadd.f32 0.0, %v183
    %v185 = vpop.f32.mrb[0].mxu0
    %186 = vdwg.mxu0
    %v187 = vadd.f32 %v99, %v179
    %v188 = vadd.f32 %v100, %v184
    %189 = vst.msk [vmem:[#allocation2] sm:$0xff] %vm105, %v187
    %190 = vst.msk [vmem:[#allocation2 + $0x8] sm:$0xff] %vm105, %v188
    %v191 = vld [vmem:[#allocation3] sm:$0xff]
    %v192 = vld [vmem:[#allocation3 + $0x8] sm:$0xff]
    %v193 = vld [vmem:[#allocation10] sm:$0xff]
    %v194 = vld [vmem:[#allocation10 + $0x8] sm:$0xff]
    %v195 = vld [vmem:[#allocation10 + $0x10] sm:$0xff]
    %v196 = vld [vmem:[#allocation10 + $0x18] sm:$0xff]
    %197 = vmatprep.subr.mxu0 0.0
    %198 = vmatpush1.msra.mxu0 %v193
    %199 = vmatprep.subr.mxu0 0.0
    %200 = vmatpush1.msra.mxu0 %v194
    %201 = vmatprep.subr.mxu0 0.0
    %202 = vmatpush1.msra.mxu0 %v195
    %203 = vmatprep.subr.mxu0 0.0
    %204 = vmatpush1.msra.mxu0 %v196
    %205 = vmatprep.subr.mxu0 0.0
    %206 = vmatpush1.msra.mxu0 0.0
    %207 = vmatprep.subr.mxu0 0.0
    %208 = vmatpush1.msra.mxu0 0.0
    %209 = vmatprep.subr.mxu0 0.0
    %210 = vmatpush1.msra.mxu0 0.0
    %211 = vmatprep.subr.mxu0 0.0
    %212 = vmatpush1.msra.mxu0 0.0
    %213 = vmatprep.subr.mxu0 0.0
    %214 = vmatpush1.msra.mxu0 0.0
    %215 = vmatprep.subr.mxu0 0.0
    %216 = vmatpush1.msra.mxu0 0.0
    %217 = vmatprep.subr.mxu0 0.0
    %218 = vmatpush1.msra.mxu0 0.0
    %219 = vmatprep.subr.mxu0 0.0
    %220 = vmatpush1.msra.mxu0 0.0
    %221 = vmatprep.subr.mxu0 0.0
    %222 = vmatpush1.msra.mxu0 0.0
    %223 = vmatprep.subr.mxu0 0.0
    %224 = vmatpush1.msra.mxu0 0.0
    %225 = vmatprep.subr.mxu0 0.0
    %226 = vmatpush1.msra.mxu0 0.0
    %227 = vmatprep.subr.mxu0 0.0
    %228 = vmatpush1.msra.mxu0 0.0
    %229 = vmatprep.subr.mxu0 0.0
    %230 = vmatpush1.msra.mxu0 0.0
    %231 = vmatprep.subr.mxu0 0.0
    %232 = vmatpush1.msra.mxu0 0.0
    %233 = vmatprep.subr.mxu0 0.0
    %234 = vmatpush1.msra.mxu0 0.0
    %235 = vmatprep.subr.mxu0 0.0
    %236 = vmatpush1.msra.mxu0 0.0
    %237 = vmatprep.subr.mxu0 0.0
    %238 = vmatpush1.msra.mxu0 0.0
    %239 = vmatprep.subr.mxu0 0.0
    %240 = vmatpush1.msra.mxu0 0.0
    %241 = vmatprep.subr.mxu0 0.0
    %242 = vmatpush1.msra.mxu0 0.0
    %243 = vmatprep.subr.mxu0 0.0
    %244 = vmatpush1.msra.mxu0 0.0
    %245 = vmatprep.subr.mxu0 0.0
    %246 = vmatpush1.msra.mxu0 0.0
    %247 = vmatprep.subr.mxu0 0.0
    %248 = vmatpush1.msra.mxu0 0.0
    %249 = vmatprep.subr.mxu0 0.0
    %250 = vmatpush1.msra.mxu0 0.0
    %251 = vmatprep.subr.mxu0 0.0
    %252 = vmatpush1.msra.mxu0 0.0
    %253 = vmatprep.subr.mxu0 0.0
    %254 = vmatpush1.msra.mxu0 0.0
    %255 = vmatprep.subr.mxu0 0.0
    %256 = vmatpush1.msra.mxu0 0.0
    %257 = vmatprep.subr.mxu0 0.0
    %258 = vmatpush1.msra.mxu0 0.0
    %259 = vmatprep.subr.mxu0 0.0
    %260 = vmatpush1.msra.mxu0 0.0
    %261 = vmatprep.mubr.f32.mxu0 0.0
    %262 = vmatmul.mubr.f32.gmra.mrb[0].mxu0 %v107
    %v263 = vpop.f32.mrb[0].mxu0
    %v264 = vadd.f32 0.0, %v263
    %v265 = vpop.f32.mrb[0].mxu0
    %266 = vmatprep.mubr.f32.mxu0 0.0
    %267 = vmatmul.mubr.f32.gmra.mrb[0].mxu0 %v110
    %v268 = vpop.f32.mrb[0].mxu0
    %v269 = vadd.f32 0.0, %v268
    %v270 = vpop.f32.mrb[0].mxu0
    %271 = vdwg.mxu0
    %v272 = vadd.f32 %v191, %v264
    %v273 = vadd.f32 %v192, %v269
    %274 = vst.msk [vmem:[#allocation3] sm:$0xff] %vm105, %v272
    %275 = vst.msk [vmem:[#allocation3 + $0x8] sm:$0xff] %vm105, %v273
    %v276 = vld [vmem:[#allocation4] sm:$0xff]
    %v277 = vld [vmem:[#allocation4 + $0x8] sm:$0xff]
    %v278 = vld [vmem:[#allocation11] sm:$0xff]
    %v279 = vld [vmem:[#allocation11 + $0x8] sm:$0xff]
    %v280 = vld [vmem:[#allocation11 + $0x10] sm:$0xff]
    %v281 = vld [vmem:[#allocation11 + $0x18] sm:$0xff]
    %282 = vmatprep.subr.mxu0 0.0
    %283 = vmatpush1.msra.mxu0 %v278
    %284 = vmatprep.subr.mxu0 0.0
    %285 = vmatpush1.msra.mxu0 %v279
    %286 = vmatprep.subr.mxu0 0.0
    %287 = vmatpush1.msra.mxu0 %v280
    %288 = vmatprep.subr.mxu0 0.0
    %289 = vmatpush1.msra.mxu0 %v281
    %290 = vmatprep.subr.mxu0 0.0
    %291 = vmatpush1.msra.mxu0 0.0
    %292 = vmatprep.subr.mxu0 0.0
    %293 = vmatpush1.msra.mxu0 0.0
    %294 = vmatprep.subr.mxu0 0.0
    %295 = vmatpush1.msra.mxu0 0.0
    %296 = vmatprep.subr.mxu0 0.0
    %297 = vmatpush1.msra.mxu0 0.0
    %298 = vmatprep.subr.mxu0 0.0
    %299 = vmatpush1.msra.mxu0 0.0
    %300 = vmatprep.subr.mxu0 0.0
    %301 = vmatpush1.msra.mxu0 0.0
    %302 = vmatprep.subr.mxu0 0.0
    %303 = vmatpush1.msra.mxu0 0.0
    %304 = vmatprep.subr.mxu0 0.0
    %305 = vmatpush1.msra.mxu0 0.0
    %306 = vmatprep.subr.mxu0 0.0
    %307 = vmatpush1.msra.mxu0 0.0
    %308 = vmatprep.subr.mxu0 0.0
    %309 = vmatpush1.msra.mxu0 0.0
    %310 = vmatprep.subr.mxu0 0.0
    %311 = vmatpush1.msra.mxu0 0.0
    %312 = vmatprep.subr.mxu0 0.0
    %313 = vmatpush1.msra.mxu0 0.0
    %314 = vmatprep.subr.mxu0 0.0
    %315 = vmatpush1.msra.mxu0 0.0
    %316 = vmatprep.subr.mxu0 0.0
    %317 = vmatpush1.msra.mxu0 0.0
    %318 = vmatprep.subr.mxu0 0.0
    %319 = vmatpush1.msra.mxu0 0.0
    %320 = vmatprep.subr.mxu0 0.0
    %321 = vmatpush1.msra.mxu0 0.0
    %322 = vmatprep.subr.mxu0 0.0
    %323 = vmatpush1.msra.mxu0 0.0
    %324 = vmatprep.subr.mxu0 0.0
    %325 = vmatpush1.msra.mxu0 0.0
    %326 = vmatprep.subr.mxu0 0.0
    %327 = vmatpush1.msra.mxu0 0.0
    %328 = vmatprep.subr.mxu0 0.0
    %329 = vmatpush1.msra.mxu0 0.0
    %330 = vmatprep.subr.mxu0 0.0
    %331 = vmatpush1.msra.mxu0 0.0
    %332 = vmatprep.subr.mxu0 0.0
    %333 = vmatpush1.msra.mxu0 0.0
    %334 = vmatprep.subr.mxu0 0.0
    %335 = vmatpush1.msra.mxu0 0.0
    %336 = vmatprep.subr.mxu0 0.0
    %337 = vmatpush1.msra.mxu0 0.0
    %338 = vmatprep.subr.mxu0 0.0
    %339 = vmatpush1.msra.mxu0 0.0
    %340 = vmatprep.subr.mxu0 0.0
    %341 = vmatpush1.msra.mxu0 0.0
    %342 = vmatprep.subr.mxu0 0.0
    %343 = vmatpush1.msra.mxu0 0.0
    %344 = vmatprep.subr.mxu0 0.0
    %345 = vmatpush1.msra.mxu0 0.0
    %346 = vmatprep.mubr.f32.mxu0 0.0
    %347 = vmatmul.mubr.f32.gmra.mrb[0].mxu0 %v107
    %v348 = vpop.f32.mrb[0].mxu0
    %v349 = vadd.f32 0.0, %v348
    %v350 = vpop.f32.mrb[0].mxu0
    %351 = vmatprep.mubr.f32.mxu0 0.0
    %352 = vmatmul.mubr.f32.gmra.mrb[0].mxu0 %v110
    %v353 = vpop.f32.mrb[0].mxu0
    %v354 = vadd.f32 0.0, %v353
    %v355 = vpop.f32.mrb[0].mxu0
    %356 = vdwg.mxu0
    %v357 = vadd.f32 %v276, %v349
    %v358 = vadd.f32 %v277, %v354
    %359 = vst.msk [vmem:[#allocation4] sm:$0xff] %vm105, %v357
    %360 = vst.msk [vmem:[#allocation4 + $0x8] sm:$0xff] %vm105, %v358
    // Predicated region
    $region50: #{tpu_custom_call.1} parent=1 // pred_check
      %p361 = pneg %p86
    $region51: #{tpu_custom_call.1} parent=1 // pred_check_branch
      %363 = sbr.rel (%p361) target = $region53
    $region52: #{tpu_custom_call.1} parent=1 // pred_region
      %v364 = vld [vmem:[#allocation2] sm:$0xff]
      %v365 = vld [vmem:[#allocation2 + $0x8] sm:$0xff]
      %v366 = vld [vmem:[%s4] sm:$0x1]
      %v368 = vlaneseq
      %v369 = vshrl.u32 %v368, 7
      %v370 = vsub.s32 0, %v369
      %v371 = vrot.slane %v366, %v370
      %v373 = vadd.f32 %v364, %v371
      %v374 = vadd.f32 %v365, %v371
      %v375 = vmul.f32 %v373, 0.35355338
      %v376 = vmul.f32 %v374, 0.35355338
      %377 = vst.msk [vmem:[#allocation13] sm:$0xff] %vm105, %v375
      %378 = vst.msk [vmem:[#allocation13 + $0x8] sm:$0xff] %vm105, %v376
      %v379 = vld [vmem:[#allocation3] sm:$0xff]
      %v380 = vld [vmem:[#allocation3 + $0x8] sm:$0xff]
      %v381 = vld [vmem:[%s5] sm:$0x1]
      %v383 = vlaneseq
      %v384 = vshrl.u32 %v383, 7
      %v385 = vsub.s32 0, %v384
      %v386 = vrot.slane %v381, %v385
      %v388 = vadd.f32 %v379, %v386
      %v389 = vadd.f32 %v380, %v386
      %390 = vst.msk [vmem:[#allocation14] sm:$0xff] %vm105, %v388
      %391 = vst.msk [vmem:[#allocation14 + $0x8] sm:$0xff] %vm105, %v389
      %v392 = vld [vmem:[#allocation4] sm:$0xff]
      %v393 = vld [vmem:[#allocation4 + $0x8] sm:$0xff]
      %v394 = vld [vmem:[%s6] sm:$0x1]
      %v396 = vlaneseq
      %v397 = vshrl.u32 %v396, 7
      %v398 = vsub.s32 0, %v397
      %v399 = vrot.slane %v394, %v398
      %v401 = vadd.f32 %v392, %v399
      %v402 = vadd.f32 %v393, %v399
      %403 = vst.msk [vmem:[#allocation16] sm:$0xff] %vm105, %v401
      %404 = vst.msk [vmem:[#allocation16 + $0x8] sm:$0xff] %vm105, %v402
    $region53: #{tpu_custom_call.1} parent=1 // pred_fallthru
      _
    // Predicated region
    $region54: #{tpu_custom_call.1} parent=1 // pred_check
      _
    $region55: #{tpu_custom_call.1} parent=1 // pred_check_branch
      %406 = sbr.rel (0) target = $region57
    $region56: #{tpu_custom_call.1} parent=1 // pred_region
      %s408 = ssub.s32 256, 256
      %409 = vsyncadd [#allocation7], %s408
      %s410 = sshll.u32 [#allocation13], 4
      %s411 = int_to_ptr.vmem [resolvable:$true] %s410
      %416 = dma.vmem_to_hbm [thread:$0]  %s411, 256, %s7, [#allocation7], 128, 128, 8
    $region57: #{tpu_custom_call.1} parent=1 // pred_fallthru
      _
    // Predicated region
    $region58: #{tpu_custom_call.1} parent=1 // pred_check
      _
    $region59: #{tpu_custom_call.1} parent=1 // pred_check_branch
      %418 = sbr.rel (0) target = $region61
    $region60: #{tpu_custom_call.1} parent=1 // pred_region
      %s420 = ssub.s32 256, 256
      %421 = vsyncadd [#allocation15], %s420
      %s422 = sshll.u32 [#allocation14], 4
      %s423 = int_to_ptr.vmem [resolvable:$true] %s422
      %428 = dma.vmem_to_hbm [thread:$0]  %s423, 256, %s8, [#allocation15], 128, 128, 8
    $region61: #{tpu_custom_call.1} parent=1 // pred_fallthru
      _
    // Predicated region
    $region62: #{tpu_custom_call.1} parent=1 // pred_check
      _
    $region63: #{tpu_custom_call.1} parent=1 // pred_check_branch
      %430 = sbr.rel (0) target = $region65
    $region64: #{tpu_custom_call.1} parent=1 // pred_region
      %s432 = ssub.s32 256, 256
      %433 = vsyncadd [#allocation15], %s432
      %s434 = sshll.u32 [#allocation16], 4
      %s435 = int_to_ptr.vmem [resolvable:$true] %s434
      %440 = dma.vmem_to_hbm [thread:$0]  %s435, 256, %s9, [#allocation15], 128, 128, 8
    $region65: #{tpu_custom_call.1} parent=1 // pred_fallthru
      _
    // Predicated region
    $region66: #{tpu_custom_call.1} parent=1 // pred_check
      _
    $region67: #{tpu_custom_call.1} parent=1 // pred_check_branch
      %442 = sbr.rel (0) target = $region69
    $region68: #{tpu_custom_call.1} parent=1 // pred_region
      %443 = dma.done [#allocation7], 256
    $region69: #{tpu_custom_call.1} parent=1 // pred_fallthru
      _
    // Predicated region
    $region70: #{tpu_custom_call.1} parent=1 // pred_check
      _
    $region71: #{tpu_custom_call.1} parent=1 // pred_check_branch
      %445 = sbr.rel (0) target = $region73
    $region72: #{tpu_custom_call.1} parent=1 // pred_region
      %446 = dma.done [#allocation15], 256
    $region73: #{tpu_custom_call.1} parent=1 // pred_fallthru
      _
    // Predicated region
    $region74: #{tpu_custom_call.1} parent=1 // pred_check
      _
    $region75: #{tpu_custom_call.1} parent=1 // pred_check_branch
      %448 = sbr.rel (0) target = $region77
    $region76: #{tpu_custom_call.1} parent=1 // pred_region
      %449 = dma.done [#allocation15], 256
    $region77: #{tpu_custom_call.1} parent=1 // pred_fallthru
      _
    %450 = vsyncpa [#allocation6], 1
    %451 = vsyncpa [#allocation9], 1
    %452 = vsyncpa [#allocation12], 1
    %453 = vsyncpa [#allocation7], 1
    %454 = vsyncpa [#allocation15], 1

</llo_original>
